<compile_context>
chip_gen: v7x
topology: tpu7x:2x2x1
jax: 0.10.0
libtpu: 0.0.40
codegen_flags: <defaults>
</compile_context>

<pallas_src>
import jax
import jax.numpy as jnp
from jax.experimental import pallas as pl
from jax.experimental.pallas import tpu as pltpu


def _round_up(n: int, m: int) -> int:
    return (n + m - 1) // m * m


# --------------------------------------------------------------------------
# Kernel
# --------------------------------------------------------------------------
def glu_kernel(x_ref, wa_ref, wb_ref, ba_ref, bb_ref, o_ref):
    """One (TM, D) x (D, TN) tile: out = (x@Wa + ba) * sigmoid(x@Wb + bb)."""
    x = x_ref[...]
    # bf16 (or f32) operands, f32 MXU accumulation; f32 biases keep a/g in f32.
    a = jnp.dot(x, wa_ref[...], preferred_element_type=jnp.float32) + ba_ref[...]
    g = jnp.dot(x, wb_ref[...], preferred_element_type=jnp.float32) + bb_ref[...]
    # Gate in f32: sigmoid -> EUP slot, multiply -> VPU. Lane-dense store.
    o_ref[...] = (a * jax.nn.sigmoid(g)).astype(o_ref.dtype)


# --------------------------------------------------------------------------
# Parameter preparation (do this ONCE at init time, not per forward call)
# --------------------------------------------------------------------------
def prepare_glu_params(w, b, *, compute_dtype=jnp.bfloat16):
    """Pre-split / pre-transpose nn.Linear(D, 2D) parameters.

    w: (2*D, D) PyTorch weight (out_features, in_features); b: (2*D,).
    Returns (wa_t, wb_t, ba, bb): weights (D, D) in `compute_dtype`
    (pre-transposed so the kernel never slices y[..., :D]/y[..., D:] across a
    vreg tile), biases (1, D) in f32.
    """
    two_d, D = w.shape
    assert two_d == 2 * D and b.shape == (2 * D,)
    wa_t = jnp.asarray(w[:D].T, dtype=compute_dtype)   # value half
    wb_t = jnp.asarray(w[D:].T, dtype=compute_dtype)   # gate half
    ba = jnp.asarray(b[:D], dtype=jnp.float32).reshape(1, D)
    bb = jnp.asarray(b[D:], dtype=jnp.float32).reshape(1, D)
    return wa_t, wb_t, ba, bb


# --------------------------------------------------------------------------
# Tile sizing / VMEM budget
# --------------------------------------------------------------------------
def _pick_row_tile(n: int, block_rows: int) -> int:
    tm = max(8, _round_up(min(block_rows, n), 8))
    # Prefer >= 2 row blocks so the "parallel" row axis can shard across both
    # v7x TensorCores (harmless on single-TC v5e/v6e).
    if n > 8:
        tm = min(tm, _round_up(pl.cdiv(n, 2), 8))
    return tm


def _pick_col_tile(d: int, block_cols: int) -> int:
    # Full width when it fits a single block; otherwise a 128-multiple column
    # tile (default 512 = multiple of 256 for full MXU tiles on v6e/v7x).
    if d <= max(block_cols, 128):
        return d
    return _round_up(min(block_cols, d), 128)


def _vmem_limit_bytes(tm, tn, d, x_itemsize, w_itemsize, out_itemsize, w_bufs):
    weights = 2 * d * tn * w_itemsize * w_bufs       # Wa + Wb column blocks
    biases = 2 * tn * 4 * w_bufs                     # ba + bb
    x_tiles = 2 * tm * d * x_itemsize                # double-buffered row tiles
    out_tiles = 2 * tm * tn * out_itemsize           # double-buffered output
    interm = 2 * tm * tn * 4                         # a / g f32 intermediates
    total = int((weights + biases + x_tiles + out_tiles + interm) * 1.5) + (2 << 20)
    return max(16 << 20, min(total, 128 << 20))


# --------------------------------------------------------------------------
# pallas_call wrapper
# --------------------------------------------------------------------------
def _glu_pallas_call(x2d, wa_t, wb_t, ba, bb, out_dtype, tm, tn,
                     single_buffer_weights):
    n, d = x2d.shape
    grid = (pl.cdiv(n, tm), pl.cdiv(d, tn))
    # Weights/biases are grid-invariant only when there is a single column
    # block; double-buffering them then buys nothing but VMEM.
    resident = single_buffer_weights and grid[1] == 1

    def _resident_spec(block_shape, index_map):
        if resident:
            return pl.BlockSpec(block_shape, index_map,
                                pipeline_mode=pl.Buffered(buffer_count=1))
        return pl.BlockSpec(block_shape, index_map)

    w_bufs = 1 if resident else 2
    vmem_limit = _vmem_limit_bytes(
        tm, tn, d,
        jnp.dtype(x2d.dtype).itemsize,
        jnp.dtype(wa_t.dtype).itemsize,
        jnp.dtype(out_dtype).itemsize,
        w_bufs,
    )

    return pl.pallas_call(
        glu_kernel,
        out_shape=jax.ShapeDtypeStruct((n, d), out_dtype),
        grid_spec=pltpu.PrefetchScalarGridSpec(
            num_scalar_prefetch=0,
            grid=grid,
            in_specs=[
                pl.BlockSpec((tm, d), lambda i, j: (i, 0)),     # x rows (streamed)
                _resident_spec((d, tn), lambda i, j: (0, j)),   # Wa^T column block
                _resident_spec((d, tn), lambda i, j: (0, j)),   # Wb^T column block
                _resident_spec((1, tn), lambda i, j: (0, j)),   # ba
                _resident_spec((1, tn), lambda i, j: (0, j)),   # bb
            ],
            out_specs=pl.BlockSpec((tm, tn), lambda i, j: (i, j)),
        ),
        compiler_params=pltpu.CompilerParams(
            dimension_semantics=("parallel", "parallel"),
            vmem_limit_bytes=vmem_limit,
        ),
    )(x2d, wa_t, wb_t, ba, bb)


def glu_forward(x, params, *, block_rows: int = 512, block_cols: int = 512,
                single_buffer_weights: bool = True):
    """GLU forward: x (..., D) -> (..., D), using prepare_glu_params output.

    block_rows: row-tile target (512-1024 good on v5e/v6e; 256-512 on v7x).
    block_cols: output-column tile target; D <= block_cols keeps weights fully
                resident, larger D is column-tiled to bound weight VMEM.
    """
    wa_t, wb_t, ba, bb = params
    D = wa_t.shape[0]
    assert x.shape[-1] == D

    orig_shape = x.shape
    # Cast activations to the weights' compute dtype (bf16 by default): the
    # MXU runs at native rate and the kernel-side x HBM stream is halved.
    x2d = x.reshape(-1, D).astype(wa_t.dtype)
    n = x2d.shape[0]

    tm = _pick_row_tile(n, block_rows)
    tn = _pick_col_tile(D, block_cols)

    try:
        out = _glu_pallas_call(x2d, wa_t, wb_t, ba, bb, x.dtype, tm, tn,
                               single_buffer_weights)
    except Exception:
        # TODO(synk): fall back to default double buffering if this jax/libtpu
        # build rejects pl.Buffered(1) on grid-invariant operands.
        if not single_buffer_weights:
            raise
        out = _glu_pallas_call(x2d, wa_t, wb_t, ba, bb, x.dtype, tm, tn, False)

    return out.reshape(orig_shape)


# --------------------------------------------------------------------------
# Pure-JAX reference (mirrors the PyTorch GLU.forward)
# --------------------------------------------------------------------------
def glu_reference(x, w, b):
    D = x.shape[-1]
    y = x @ w.T + b
    return y[..., :D] * jax.nn.sigmoid(y[..., D:])


if __name__ == "__main__":
    # --- Test 1: module-sized shapes (batch=2, seq=8, input_dim=32).
    #     Single column block -> resident single-buffered weights, 2 row steps.
    B, S, D = 2, 8, 32
    key = jax.random.PRNGKey(0)
    kx, kw, kb = jax.random.split(key, 3)
    x = jax.random.normal(kx, (B, S, D), jnp.float32)
    w = 0.1 * jax.random.normal(kw, (2 * D, D), jnp.float32)   # (out, in)
    b = 0.1 * jax.random.normal(kb, (2 * D,), jnp.float32)
    ref = glu_reference(x, w, b)

    params_bf16 = prepare_glu_params(w, b)                      # bf16 matmul operands
    out = jax.block_until_ready(glu_forward(x, params_bf16, block_rows=8))
    assert out.shape == (B, S, D)
    assert jnp.allclose(out, ref, atol=2e-2, rtol=2e-2), "bf16 kernel mismatch"

    # f32 compute path for a tight numerical check.
    params_f32 = prepare_glu_params(w, b, compute_dtype=jnp.float32)
    out32 = jax.block_until_ready(glu_forward(x, params_f32, block_rows=8))
    assert jnp.allclose(out32, ref, atol=1e-5, rtol=1e-5), "f32 kernel mismatch"

    # --- Test 2: exercise column tiling + ragged last row block
    #     (N=18 rows -> 3 row blocks of 8; D=256 with 128-wide column blocks).
    B2, S2, D2 = 2, 9, 256
    kx2, kw2, kb2 = jax.random.split(jax.random.PRNGKey(1), 3)
    x2 = jax.random.normal(kx2, (B2, S2, D2), jnp.float32)
    w2 = 0.05 * jax.random.normal(kw2, (2 * D2, D2), jnp.float32)
    b2 = 0.05 * jax.random.normal(kb2, (2 * D2,), jnp.float32)
    params2 = prepare_glu_params(w2, b2)
    out2 = jax.block_until_ready(
        glu_forward(x2, params2, block_rows=8, block_cols=128))
    ref2 = glu_reference(x2, w2, b2)
    assert out2.shape == (B2, S2, D2)
    assert jnp.allclose(out2, ref2, atol=5e-2, rtol=5e-2), "tiled kernel mismatch"

    print("KERNEL_OK")
</pallas_src>

<mosaic_0001>
module attributes {stable_mosaic.version = 11 : i64} {
  func.func @glu_kernel(%arg0: i32, %arg1: i32, %arg2: memref<8x32xbf16, #tpu.memory_space<vmem>>, %arg3: memref<32x32xbf16, #tpu.memory_space<vmem>>, %arg4: memref<32x32xbf16, #tpu.memory_space<vmem>>, %arg5: memref<1x32xf32, #tpu.memory_space<vmem>>, %arg6: memref<1x32xf32, #tpu.memory_space<vmem>>, %arg7: memref<8x32xf32, #tpu.memory_space<vmem>>) attributes {dimension_semantics = [#tpu.dimension_semantics<parallel>, #tpu.dimension_semantics<parallel>], iteration_bounds = array<i64: 2, 1>, scalar_prefetch = 0 : i64, scratch_operands = 0 : i64, tpu.core_type = #tpu.core_type<tc>, window_params = [{transform_indices = @transform_0, window_bounds = array<i64: 8, 32>}, {pipeline_mode = #tpu.pipeline_mode<synchronous>, transform_indices = @transform_1, window_bounds = array<i64: 32, 32>}, {pipeline_mode = #tpu.pipeline_mode<synchronous>, transform_indices = @transform_2, window_bounds = array<i64: 32, 32>}, {pipeline_mode = #tpu.pipeline_mode<synchronous>, transform_indices = @transform_3, window_bounds = array<i64: 1, 32>}, {pipeline_mode = #tpu.pipeline_mode<synchronous>, transform_indices = @transform_4, window_bounds = array<i64: 1, 32>}, {transform_indices = @transform_5, window_bounds = array<i64: 8, 32>}]} {
    %c0 = arith.constant 0 : index
    %c0_0 = arith.constant 0 : index
    %0 = vector.load %arg2[%c0, %c0_0] : memref<8x32xbf16, #tpu.memory_space<vmem>>, vector<8x32xbf16>
    %c0_1 = arith.constant 0 : index
    %c0_2 = arith.constant 0 : index
    %1 = vector.load %arg3[%c0_1, %c0_2] : memref<32x32xbf16, #tpu.memory_space<vmem>>, vector<32x32xbf16>
    %cst = arith.constant dense<0.000000e+00> : vector<8x32xf32>
    %2 = tpu.matmul %0, %1, %cst {dimension_numbers = #tpu.dot_dimension_numbers<[1], [0], [0], [1], [0, 0, 1, 1], [], []>} : vector<8x32xbf16>, vector<32x32xbf16>, vector<8x32xf32> -> vector<8x32xf32>
    %c0_3 = arith.constant 0 : index
    %c0_4 = arith.constant 0 : index
    %3 = vector.load %arg5[%c0_3, %c0_4] : memref<1x32xf32, #tpu.memory_space<vmem>>, vector<1x32xf32>
    %4 = vector.broadcast %3 : vector<1x32xf32> to vector<8x32xf32>
    %5 = arith.addf %2, %4 : vector<8x32xf32>
    %c0_5 = arith.constant 0 : index
    %c0_6 = arith.constant 0 : index
    %6 = vector.load %arg4[%c0_5, %c0_6] : memref<32x32xbf16, #tpu.memory_space<vmem>>, vector<32x32xbf16>
    %cst_7 = arith.constant dense<0.000000e+00> : vector<8x32xf32>
    %7 = tpu.matmul %0, %6, %cst_7 {dimension_numbers = #tpu.dot_dimension_numbers<[1], [0], [0], [1], [0, 0, 1, 1], [], []>} : vector<8x32xbf16>, vector<32x32xbf16>, vector<8x32xf32> -> vector<8x32xf32>
    %c0_8 = arith.constant 0 : index
    %c0_9 = arith.constant 0 : index
    %8 = vector.load %arg6[%c0_8, %c0_9] : memref<1x32xf32, #tpu.memory_space<vmem>>, vector<1x32xf32>
    %9 = vector.broadcast %8 : vector<1x32xf32> to vector<8x32xf32>
    %10 = arith.addf %7, %9 : vector<8x32xf32>
    %11 = arith.negf %10 : vector<8x32xf32>
    %12 = math.exp %11 : vector<8x32xf32>
    %cst_10 = arith.constant 1.000000e+00 : f32
    %13 = vector.broadcast %cst_10 : f32 to vector<8x32xf32>
    %14 = arith.addf %13, %12 : vector<8x32xf32>
    %15 = arith.divf %13, %14 : vector<8x32xf32>
    %16 = arith.mulf %5, %15 : vector<8x32xf32>
    %c0_11 = arith.constant 0 : index
    %c0_12 = arith.constant 0 : index
    %17 = vector.load %arg7[%c0_11, %c0_12] : memref<8x32xf32, #tpu.memory_space<vmem>>, vector<8x32xf32>
    tpu.vector_store %arg7[%c0_11, %c0_12], %16 {strides = array<i32>} : memref<8x32xf32, #tpu.memory_space<vmem>>, vector<8x32xf32>,
    return
  }
  func.func @transform_0(%arg0: i32, %arg1: i32) -> (i32, i32) {
    %c0_i32 = arith.constant 0 : i32
    %c0_i32_0 = arith.constant 0 : i32
    return %arg0, %c0_i32 : i32, i32
  }
  func.func @transform_1(%arg0: i32, %arg1: i32) -> (i32, i32) {
    %c0_i32 = arith.constant 0 : i32
    %c0_i32_0 = arith.constant 0 : i32
    return %c0_i32, %arg1 : i32, i32
  }
  func.func @transform_2(%arg0: i32, %arg1: i32) -> (i32, i32) {
    %c0_i32 = arith.constant 0 : i32
    %c0_i32_0 = arith.constant 0 : i32
    return %c0_i32, %arg1 : i32, i32
  }
  func.func @transform_3(%arg0: i32, %arg1: i32) -> (i32, i32) {
    %c0_i32 = arith.constant 0 : i32
    %c0_i32_0 = arith.constant 0 : i32
    return %c0_i32, %arg1 : i32, i32
  }
  func.func @transform_4(%arg0: i32, %arg1: i32) -> (i32, i32) {
    %c0_i32 = arith.constant 0 : i32
    %c0_i32_0 = arith.constant 0 : i32
    return %c0_i32, %arg1 : i32, i32
  }
  func.func @transform_5(%arg0: i32, %arg1: i32) -> (i32, i32) {
    %c0_i32 = arith.constant 0 : i32
    return %arg0, %arg1 : i32, i32
  }
}

module attributes {stable_mosaic.version = 11 : i64} {
  func.func @glu_kernel(%arg0: i32, %arg1: i32, %arg2: memref<8x32xbf16, #tpu.memory_space<vmem>>, %arg3: memref<32x32xbf16, #tpu.memory_space<vmem>>, %arg4: memref<32x32xbf16, #tpu.memory_space<vmem>>, %arg5: memref<1x32xf32, #tpu.memory_space<vmem>>, %arg6: memref<1x32xf32, #tpu.memory_space<vmem>>, %arg7: memref<8x32xf32, #tpu.memory_space<vmem>>) attributes {dimension_semantics = [#tpu.dimension_semantics<parallel>, #tpu.dimension_semantics<parallel>], iteration_bounds = array<i64: 2, 1>, scalar_prefetch = 0 : i64, scratch_operands = 0 : i64, tpu.core_type = #tpu.core_type<tc>, window_params = [{transform_indices = @transform_0, window_bounds = array<i64: 8, 32>}, {transform_indices = @transform_1, window_bounds = array<i64: 32, 32>}, {transform_indices = @transform_2, window_bounds = array<i64: 32, 32>}, {transform_indices = @transform_3, window_bounds = array<i64: 1, 32>}, {transform_indices = @transform_4, window_bounds = array<i64: 1, 32>}, {transform_indices = @transform_5, window_bounds = array<i64: 8, 32>}]} {
    %c0 = arith.constant 0 : index
    %c0_0 = arith.constant 0 : index
    %0 = vector.load %arg2[%c0, %c0_0] : memref<8x32xbf16, #tpu.memory_space<vmem>>, vector<8x32xbf16>
    %c0_1 = arith.constant 0 : index
    %c0_2 = arith.constant 0 : index
    %1 = vector.load %arg3[%c0_1, %c0_2] : memref<32x32xbf16, #tpu.memory_space<vmem>>, vector<32x32xbf16>
    %cst = arith.constant dense<0.000000e+00> : vector<8x32xf32>
    %2 = tpu.matmul %0, %1, %cst {dimension_numbers = #tpu.dot_dimension_numbers<[1], [0], [0], [1], [0, 0, 1, 1], [], []>} : vector<8x32xbf16>, vector<32x32xbf16>, vector<8x32xf32> -> vector<8x32xf32>
    %c0_3 = arith.constant 0 : index
    %c0_4 = arith.constant 0 : index
    %3 = vector.load %arg5[%c0_3, %c0_4] : memref<1x32xf32, #tpu.memory_space<vmem>>, vector<1x32xf32>
    %4 = vector.broadcast %3 : vector<1x32xf32> to vector<8x32xf32>
    %5 = arith.addf %2, %4 : vector<8x32xf32>
    %c0_5 = arith.constant 0 : index
    %c0_6 = arith.constant 0 : index
    %6 = vector.load %arg4[%c0_5, %c0_6] : memref<32x32xbf16, #tpu.memory_space<vmem>>, vector<32x32xbf16>
    %cst_7 = arith.constant dense<0.000000e+00> : vector<8x32xf32>
    %7 = tpu.matmul %0, %6, %cst_7 {dimension_numbers = #tpu.dot_dimension_numbers<[1], [0], [0], [1], [0, 0, 1, 1], [], []>} : vector<8x32xbf16>, vector<32x32xbf16>, vector<8x32xf32> -> vector<8x32xf32>
    %c0_8 = arith.constant 0 : index
    %c0_9 = arith.constant 0 : index
    %8 = vector.load %arg6[%c0_8, %c0_9] : memref<1x32xf32, #tpu.memory_space<vmem>>, vector<1x32xf32>
    %9 = vector.broadcast %8 : vector<1x32xf32> to vector<8x32xf32>
    %10 = arith.addf %7, %9 : vector<8x32xf32>
    %11 = arith.negf %10 : vector<8x32xf32>
    %12 = math.exp %11 : vector<8x32xf32>
    %cst_10 = arith.constant 1.000000e+00 : f32
    %13 = vector.broadcast %cst_10 : f32 to vector<8x32xf32>
    %14 = arith.addf %13, %12 : vector<8x32xf32>
    %15 = arith.divf %13, %14 : vector<8x32xf32>
    %16 = arith.mulf %5, %15 : vector<8x32xf32>
    %c0_11 = arith.constant 0 : index
    %c0_12 = arith.constant 0 : index
    %17 = vector.load %arg7[%c0_11, %c0_12] : memref<8x32xf32, #tpu.memory_space<vmem>>, vector<8x32xf32>
    tpu.vector_store %arg7[%c0_11, %c0_12], %16 {strides = array<i32>} : memref<8x32xf32, #tpu.memory_space<vmem>>, vector<8x32xf32>,
    return
  }
  func.func @transform_0(%arg0: i32, %arg1: i32) -> (i32, i32) {
    %c0_i32 = arith.constant 0 : i32
    %c0_i32_0 = arith.constant 0 : i32
    return %arg0, %c0_i32 : i32, i32
  }
  func.func @transform_1(%arg0: i32, %arg1: i32) -> (i32, i32) {
    %c0_i32 = arith.constant 0 : i32
    %c0_i32_0 = arith.constant 0 : i32
    return %c0_i32, %arg1 : i32, i32
  }
  func.func @transform_2(%arg0: i32, %arg1: i32) -> (i32, i32) {
    %c0_i32 = arith.constant 0 : i32
    %c0_i32_0 = arith.constant 0 : i32
    return %c0_i32, %arg1 : i32, i32
  }
  func.func @transform_3(%arg0: i32, %arg1: i32) -> (i32, i32) {
    %c0_i32 = arith.constant 0 : i32
    %c0_i32_0 = arith.constant 0 : i32
    return %c0_i32, %arg1 : i32, i32
  }
  func.func @transform_4(%arg0: i32, %arg1: i32) -> (i32, i32) {
    %c0_i32 = arith.constant 0 : i32
    %c0_i32_0 = arith.constant 0 : i32
    return %c0_i32, %arg1 : i32, i32
  }
  func.func @transform_5(%arg0: i32, %arg1: i32) -> (i32, i32) {
    %c0_i32 = arith.constant 0 : i32
    return %arg0, %arg1 : i32, i32
  }
}

</mosaic_0001>

<llo_original>
// kernel: tpu_custom_call.1
$region0: #{tpu_custom_call.1}
  #allocation0 [shape = 'u32[]', space=smem, size = 0x4, offset = 0x4, fixed_abs, tag = 'smem constant byte address 0x4 - core index']
  #allocation1 [shape = 'u32[144,128]{1,0:T(1,128)}', space=vmem, size = 0x12000, scoped, tag = 'internal scratch']
  %s0 = inlined_call_operand.hbm [shape: bf16[16,32], index: 0, kind: input, shape index: {}]
  %s1 = inlined_call_operand.hbm [shape: bf16[32,32], index: 1, kind: input, shape index: {}]
  %s2 = inlined_call_operand.hbm [shape: bf16[32,32], index: 2, kind: input, shape index: {}]
  %s3 = inlined_call_operand.vmem [shape: f32[1,32], index: 3, kind: input, shape index: {}]
  %s4 = inlined_call_operand.vmem [shape: f32[1,32], index: 4, kind: input, shape index: {}]
  %s5 = inlined_call_operand.hbm [shape: f32[16,32], index: 5, kind: output, shape index: {}]
  %s6 = sld [smem:[#allocation0]]
  $region65: #{tpu_custom_call.1} parent=0
    _
  %s8 = ssub.s32 1, %s6
  %s9 = scalar_select 0, %s8, %s6
  $region1: #{tpu_custom_call.1} parent=0
    #allocation2 [shape = 'u8[4096]{0}', space=vmem, size = 0x1000, scoped, tag = 'input window, operand 0']
    #allocation3 [shape = 's32[2]{0}', space=sflag, size = 0x8, scoped, tag = 'scoped memory for tpu_custom_call.1']
    #allocation4 [shape = 's32[2]{0}', space=sflag, size = 0x8, scoped, tag = 'scoped memory for tpu_custom_call.1']
    #allocation5 [shape = 'u8[8192]{0}', space=vmem, size = 0x2000, scoped, tag = 'input window, operand 1, single buffered']
    #allocation6 [shape = 's32[1]{0}', space=sflag, size = 0x4, scoped, tag = 'scoped memory for tpu_custom_call.1']
    #allocation7 [shape = 'u8[8192]{0}', space=vmem, size = 0x2000, scoped, tag = 'input window, operand 2, single buffered']
    #allocation8 [shape = 'u8[8192]{0}', space=vmem, size = 0x2000, scoped, tag = 'output window, operand 0']
    %10 = vsyncpa [#allocation3], 0
    %s11 = scalar_lea.sflag [#allocation3], 1
    %12 = vsyncpa %s11, 0
    %13 = vsyncpa [#allocation6], 0
    %14 = vsyncpa [#allocation4], 0
    %s15 = scalar_lea.sflag [#allocation4], 1
    %16 = vsyncpa %s15, 0
    loop: start=0, step=1, limit=4
    $region2: #{tpu_custom_call.1} parent=1 // loop_pre_header
      _
    $region3: #{tpu_custom_call.1} parent=1 // loop_header
      %s18 = sphi 0, %s22
      %p19 = scmp.ge.s32.totalorder %s18, 4
      %s25 = sphi 0, %s37
      %s26 = sphi 0, %s33
      %s27 = sphi 0, %s25
      %s28 = sphi 0, %s26
      %s29 = sphi 0, %s27
      %s30 = sphi 0, %s28
      %s40 = sphi 0, %s42
      %s43 = sphi 0, %s40
      %s44 = sphi 0, %s43
      %s60 = sphi 0, %s44
      %s66 = sphi 0, %s68
      %s69 = sphi 0, %s66
      %s70 = sphi 0, %s69
      %s86 = sphi 0, %s70
      %s92 = sphi 0, %s94
      %s95 = sphi 0, %s92
      %s96 = sphi 0, %s95
      %s112 = sphi 0, %s96
      %s118 = sphi 0, %s120
      %s121 = sphi 0, %s118
      %s122 = sphi 0, %s121
      %s138 = sphi 0, %s122
      %s144 = sphi 0, %s146
      %s147 = sphi 0, %s144
      %s148 = sphi 0, %s147
      %s164 = sphi 0, %s148
      %s172 = sphi 0, %s174
      %s175 = sphi 0, %s172
      %s176 = sphi 0, %s175
      %s192 = sphi 0, %s176
    $region4: #{tpu_custom_call.1} parent=1 // loop_header_branch
      %21 = sbr.rel (%p19) target = $region8
    $region5: #{tpu_custom_call.1} parent=1 // loop_body
      %s23 = ssub.s32 %s18, 1
      %s24 = ssub.s32 %s18, 2
      %s31 = sadd.s32 1, %s26
      %p32 = scmp.ge.s32.totalorder %s31, 1
      %s33 = scalar_select %p32, 0, %s31
      %s34 = sadd.s32 1, %s25
      %s35 = scalar_select %p32, %s34, %s25
      %p36 = scmp.ge.s32.totalorder %s35, 2
      %s37 = scalar_select %p36, 0, %s35
      %s38 = ssub.s32 %s25, %s37
      %p39 = scmp.eq.s32.totalorder %s38, 0
      %s41 = sadd.s32 %s40, 1
      %s42 = scalar_select %p39, %s40, %s41
      %p45 = pneg %p39
      %p46 = scmp.eq.s32.totalorder %s18, 1
      %p47 = por %p45, %p46
      %p48 = scmp.ne.s32.totalorder %s40, %s43
      %p49 = scmp.eq.s32.totalorder %s18, 0
      %p50 = por %p48, %p49
      %p51 = scmp.ne.s32.totalorder %s40, %s43
      %p52 = scmp.eq.s32.totalorder %s23, 1
      %p53 = por %p51, %p52
      %p54 = scmp.ne.s32.totalorder %s43, %s44
      %p55 = scmp.eq.s32.totalorder %s23, 0
      %p56 = por %p54, %p55
      %p57 = scmp.ne.s32.totalorder %s43, %s44
      %p58 = scmp.eq.s32.totalorder %s24, 1
      %p59 = por %p57, %p58
      %p61 = scmp.ne.s32.totalorder %s44, %s60
      %p62 = scmp.eq.s32.totalorder %s24, 0
      %p63 = por %p61, %p62
      %s64 = ssub.s32 %s26, %s33
      %p65 = scmp.eq.s32.totalorder %s64, 0
      %s67 = sadd.s32 %s66, 1
      %s68 = scalar_select %p65, %s66, %s67
      %p71 = pneg %p65
      %p72 = scmp.eq.s32.totalorder %s18, 1
      %p73 = por %p71, %p72
      %p74 = scmp.ne.s32.totalorder %s66, %s69
      %p75 = scmp.eq.s32.totalorder %s18, 0
      %p76 = por %p74, %p75
      %p77 = scmp.ne.s32.totalorder %s66, %s69
      %p78 = scmp.eq.s32.totalorder %s23, 1
      %p79 = por %p77, %p78
      %p80 = scmp.ne.s32.totalorder %s69, %s70
      %p81 = scmp.eq.s32.totalorder %s23, 0
      %p82 = por %p80, %p81
      %p83 = scmp.ne.s32.totalorder %s69, %s70
      %p84 = scmp.eq.s32.totalorder %s24, 1
      %p85 = por %p83, %p84
      %p87 = scmp.ne.s32.totalorder %s70, %s86
      %p88 = scmp.eq.s32.totalorder %s24, 0
      %p89 = por %p87, %p88
      %s90 = ssub.s32 %s26, %s33
      %p91 = scmp.eq.s32.totalorder %s90, 0
      %s93 = sadd.s32 %s92, 1
      %s94 = scalar_select %p91, %s92, %s93
      %p97 = pneg %p91
      %p98 = scmp.eq.s32.totalorder %s18, 1
      %p99 = por %p97, %p98
      %p100 = scmp.ne.s32.totalorder %s92, %s95
      %p101 = scmp.eq.s32.totalorder %s18, 0
      %p102 = por %p100, %p101
      %p103 = scmp.ne.s32.totalorder %s92, %s95
      %p104 = scmp.eq.s32.totalorder %s23, 1
      %p105 = por %p103, %p104
      %p106 = scmp.ne.s32.totalorder %s95, %s96
      %p107 = scmp.eq.s32.totalorder %s23, 0
      %p108 = por %p106, %p107
      %p109 = scmp.ne.s32.totalorder %s95, %s96
      %p110 = scmp.eq.s32.totalorder %s24, 1
      %p111 = por %p109, %p110
      %p113 = scmp.ne.s32.totalorder %s96, %s112
      %p114 = scmp.eq.s32.totalorder %s24, 0
      %p115 = por %p113, %p114
      %s116 = ssub.s32 %s26, %s33
      %p117 = scmp.eq.s32.totalorder %s116, 0
      %s119 = sadd.s32 %s118, 1
      %s120 = scalar_select %p117, %s118, %s119
      %p123 = pneg %p117
      %p124 = scmp.eq.s32.totalorder %s18, 1
      %p125 = por %p123, %p124
      %p126 = scmp.ne.s32.totalorder %s118, %s121
      %p127 = scmp.eq.s32.totalorder %s18, 0
      %p128 = por %p126, %p127
      %p129 = scmp.ne.s32.totalorder %s118, %s121
      %p130 = scmp.eq.s32.totalorder %s23, 1
      %p131 = por %p129, %p130
      %p132 = scmp.ne.s32.totalorder %s121, %s122
      %p133 = scmp.eq.s32.totalorder %s23, 0
      %p134 = por %p132, %p133
      %p135 = scmp.ne.s32.totalorder %s121, %s122
      %p136 = scmp.eq.s32.totalorder %s24, 1
      %p137 = por %p135, %p136
      %p139 = scmp.ne.s32.totalorder %s122, %s138
      %p140 = scmp.eq.s32.totalorder %s24, 0
      %p141 = por %p139, %p140
      %s142 = ssub.s32 %s26, %s33
      %p143 = scmp.eq.s32.totalorder %s142, 0
      %s145 = sadd.s32 %s144, 1
      %s146 = scalar_select %p143, %s144, %s145
      %p149 = pneg %p143
      %p150 = scmp.eq.s32.totalorder %s18, 1
      %p151 = por %p149, %p150
      %p152 = scmp.ne.s32.totalorder %s144, %s147
      %p153 = scmp.eq.s32.totalorder %s18, 0
      %p154 = por %p152, %p153
      %p155 = scmp.ne.s32.totalorder %s144, %s147
      %p156 = scmp.eq.s32.totalorder %s23, 1
      %p157 = por %p155, %p156
      %p158 = scmp.ne.s32.totalorder %s147, %s148
      %p159 = scmp.eq.s32.totalorder %s23, 0
      %p160 = por %p158, %p159
      %p161 = scmp.ne.s32.totalorder %s147, %s148
      %p162 = scmp.eq.s32.totalorder %s24, 1
      %p163 = por %p161, %p162
      %p165 = scmp.ne.s32.totalorder %s148, %s164
      %p166 = scmp.eq.s32.totalorder %s24, 0
      %p167 = por %p165, %p166
      %s168 = ssub.s32 %s25, %s37
      %s169 = ssub.s32 %s26, %s33
      %s170 = sor.u32 %s168, %s169
      %p171 = scmp.eq.s32.totalorder %s170, 0
      %s173 = sadd.s32 %s172, 1
      %s174 = scalar_select %p171, %s172, %s173
      %p177 = pneg %p171
      %p178 = scmp.eq.s32.totalorder %s18, 1
      %p179 = por %p177, %p178
      %p180 = scmp.ne.s32.totalorder %s172, %s175
      %p181 = scmp.eq.s32.totalorder %s18, 0
      %p182 = por %p180, %p181
      %p183 = scmp.ne.s32.totalorder %s172, %s175
      %p184 = scmp.eq.s32.totalorder %s23, 1
      %p185 = por %p183, %p184
      %p186 = scmp.ne.s32.totalorder %s175, %s176
      %p187 = scmp.eq.s32.totalorder %s23, 0
      %p188 = por %p186, %p187
      %p189 = scmp.ne.s32.totalorder %s175, %s176
      %p190 = scmp.eq.s32.totalorder %s24, 1
      %p191 = por %p189, %p190
      %p193 = scmp.ne.s32.totalorder %s176, %s192
      %p194 = scmp.eq.s32.totalorder %s24, 0
      %p195 = por %p193, %p194
      %p196 = scmp.le.s32.totalorder 1, %s18
      %p197 = scmp.lt.s32.totalorder %s18, 3
      %p198 = pnand %p196, %p197
      %p199 = pneg %p198
      // Predicated region
      $region9: #{tpu_custom_call.1} parent=5 // pred_check
        _
      $region10: #{tpu_custom_call.1} parent=5 // pred_check_branch
        %201 = sbr.rel (%p198) target = $region12
      $region11: #{tpu_custom_call.1} parent=5 // pred_region
        %s202 = ssub.s32 %s18, 1
        // Predicated region
        $region13: #{tpu_custom_call.1} parent=11 // pred_check
          %p203 = pneg %p82
        $region14: #{tpu_custom_call.1} parent=11 // pred_check_branch
          %205 = sbr.rel (%p203) target = $region16
        $region15: #{tpu_custom_call.1} parent=11 // pred_region
          %s207 = ssub.s32 256, 256
          %208 = vsyncadd [#allocation6], %s207
          %s209 = smul.addr %s28, 64
          %s210 = scalar_lea.hbm %s1, %s209
          %s211 = sshll.u32 [#allocation5], 4
          %s212 = int_to_ptr.vmem [resolvable:$true] %s211
          %217 = dma.hbm_to_vmem [thread:$0]  %s210, 256, %s212, [#allocation6], 64, 64, 4
        $region16: #{tpu_custom_call.1} parent=11 // pred_fallthru
          _
        // Predicated region
        $region17: #{tpu_custom_call.1} parent=11 // pred_check
          %p218 = pneg %p108
        $region18: #{tpu_custom_call.1} parent=11 // pred_check_branch
          %220 = sbr.rel (%p218) target = $region20
        $region19: #{tpu_custom_call.1} parent=11 // pred_region
          %s222 = ssub.s32 256, 256
          %223 = vsyncadd [#allocation6], %s222
          %s224 = smul.addr %s28, 64
          %s225 = scalar_lea.hbm %s2, %s224
          %s226 = sshll.u32 [#allocation7], 4
          %s227 = int_to_ptr.vmem [resolvable:$true] %s226
          %232 = dma.hbm_to_vmem [thread:$0]  %s225, 256, %s227, [#allocation6], 64, 64, 4
        $region20: #{tpu_custom_call.1} parent=11 // pred_fallthru
          _
        // Predicated region
        $region21: #{tpu_custom_call.1} parent=11 // pred_check
          %p233 = pneg %p134
        $region22: #{tpu_custom_call.1} parent=11 // pred_check_branch
          %235 = sbr.rel (%p233) target = $region24
        $region23: #{tpu_custom_call.1} parent=11 // pred_region
          %p236 = scmp.lt.s32.totalorder %s28, 0
          %s237 = scalar_select %p236, %s28, 0
          %s238 = scalar_lea.vmem %s3, %s237
        $region24: #{tpu_custom_call.1} parent=11 // pred_fallthru
          _
        // Predicated region
        $region25: #{tpu_custom_call.1} parent=11 // pred_check
          %p239 = pneg %p160
        $region26: #{tpu_custom_call.1} parent=11 // pred_check_branch
          %241 = sbr.rel (%p239) target = $region28
        $region27: #{tpu_custom_call.1} parent=11 // pred_region
          %p242 = scmp.lt.s32.totalorder %s28, 0
          %s243 = scalar_select %p242, %s28, 0
          %s244 = scalar_lea.vmem %s4, %s243
        $region28: #{tpu_custom_call.1} parent=11 // pred_fallthru
          _
      $region12: #{tpu_custom_call.1} parent=5 // pred_fallthru
        _
      %p245 = scmp.lt.s32.totalorder %s18, 2
      // Predicated region
      $region29: #{tpu_custom_call.1} parent=5 // pred_check
        %p246 = pneg %p245
      $region30: #{tpu_custom_call.1} parent=5 // pred_check_branch
        %248 = sbr.rel (%p246) target = $region32
      $region31: #{tpu_custom_call.1} parent=5 // pred_region
        // Predicated region
        $region33: #{tpu_custom_call.1} parent=31 // pred_check
          %p249 = pneg %p50
        $region34: #{tpu_custom_call.1} parent=31 // pred_check_branch
          %251 = sbr.rel (%p249) target = $region36
        $region35: #{tpu_custom_call.1} parent=31 // pred_region
          %s252 = sand.u32 %s40, 1
          %s253 = scalar_lea.sflag [#allocation3], %s252
          %s254 = sand.u32 %s40, 1
          %s255 = smul.addr %s254, 4
          %s256 = scalar_lea.vmem [#allocation2], %s255
          %s258 = ssub.s32 64, 64
          %259 = vsyncadd %s253, %s258
          %s260 = smul.addr %s25, 64
          %s261 = scalar_lea.hbm %s0, %s260
          %s263 = sshll.u32 %s256, 4
          %s264 = int_to_ptr.vmem [resolvable:$true] %s263
          %266 = dma.hbm_to_vmem [thread:$0]  %s261, 64, %s264, %s253
        $region36: #{tpu_custom_call.1} parent=31 // pred_fallthru
          _
      $region32: #{tpu_custom_call.1} parent=5 // pred_fallthru
        _
      %p267 = scmp.le.s32.totalorder 1, %s18
      %p268 = scmp.lt.s32.totalorder %s18, 3
      %p269 = pnand %p267, %p268
      %p270 = pneg %p269
      // Predicated region
      $region37: #{tpu_custom_call.1} parent=5 // pred_check
        _
      $region38: #{tpu_custom_call.1} parent=5 // pred_check_branch
        %272 = sbr.rel (%p269) target = $region40
      $region39: #{tpu_custom_call.1} parent=5 // pred_region
        %s273 = ssub.s32 %s18, 1
        %s274 = sand.u32 %s43, 1
        %s275 = scalar_lea.sflag [#allocation3], %s274
        %s276 = sand.u32 %s43, 1
        %s277 = smul.addr %s276, 4
        %s278 = scalar_lea.vmem [#allocation2], %s277
        // Predicated region
        $region41: #{tpu_custom_call.1} parent=39 // pred_check
          %p279 = pneg %p56
        $region42: #{tpu_custom_call.1} parent=39 // pred_check_branch
          %281 = sbr.rel (%p279) target = $region44
        $region43: #{tpu_custom_call.1} parent=39 // pred_region
          %282 = dma.done %s275, 64
        $region44: #{tpu_custom_call.1} parent=39 // pred_fallthru
          _
        // Predicated region
        $region45: #{tpu_custom_call.1} parent=39 // pred_check
          %p283 = pneg %p82
        $region46: #{tpu_custom_call.1} parent=39 // pred_check_branch
          %285 = sbr.rel (%p283) target = $region48
        $region47: #{tpu_custom_call.1} parent=39 // pred_region
          %286 = dma.done [#allocation6], 256
        $region48: #{tpu_custom_call.1} parent=39 // pred_fallthru
          _
        // Predicated region
        $region49: #{tpu_custom_call.1} parent=39 // pred_check
          %p287 = pneg %p108
        $region50: #{tpu_custom_call.1} parent=39 // pred_check_branch
          %289 = sbr.rel (%p287) target = $region52
        $region51: #{tpu_custom_call.1} parent=39 // pred_region
          %290 = dma.done [#allocation6], 256
        $region52: #{tpu_custom_call.1} parent=39 // pred_fallthru
          _
        %s291 = sand.u32 %s43, 1
        %s292 = scalar_lea.sflag [#allocation3], %s291
        %s293 = sand.u32 %s43, 1
        %s294 = smul.addr %s293, 4
        %s295 = scalar_lea.vmem [#allocation2], %s294
        %p296 = pneg %p56
        %p297 = pneg %p53
        %p298 = pneg %p82
        %p299 = pneg %p79
        %p300 = pneg %p108
        %p301 = pneg %p105
        %p302 = scmp.lt.s32.totalorder %s28, 0
        %s303 = scalar_select %p302, %s28, 0
        %s304 = scalar_lea.vmem %s3, %s303
        %p305 = pneg %p134
        %p306 = pneg %p131
        %p307 = scmp.lt.s32.totalorder %s28, 0
        %s308 = scalar_select %p307, %s28, 0
        %s309 = scalar_lea.vmem %s4, %s308
        %p310 = pneg %p160
        %p311 = pneg %p157
        %p312 = pneg %p188
        %p313 = pneg %p185
        %s314 = sand.u32 %s175, 1
        %s315 = scalar_lea.sflag [#allocation4], %s314
        %s316 = sand.u32 %s175, 1
        %s317 = smul.addr %s316, 8
        %s318 = scalar_lea.vmem [#allocation8], %s317
        %p319 = scmp.lt.s32.totalorder %s28, 0
        %s320 = scalar_select %p319, %s28, 0
        %s321 = scalar_lea.vmem %s3, %s320
        %p322 = scmp.lt.s32.totalorder %s28, 0
        %s323 = scalar_select %p322, %s28, 0
        %s324 = scalar_lea.vmem %s4, %s323
        %v326 = vld [vmem:[%s278] sm:$0xf]
        %v327 = vld [vmem:[#allocation5] sm:$0xf]
        %v328 = vld [vmem:[#allocation5 + $0x4] sm:$0xf]
        %v329 = vld [vmem:[#allocation5 + $0x8] sm:$0xf]
        %v330 = vld [vmem:[#allocation5 + $0xc] sm:$0xf]
        %v331 = vld [vmem:[%s321] sm:$0x1]
        %v333 = vlaneseq
        %v334 = vshrl.u32 %v333, 7
        %v335 = vsub.s32 0, %v334
        %v336 = vrot.slane %v331, %v335
        %v342 = vunpack.c.l.b16 %v327
        %v343 = vunpack.c.l.b16 %v328
        %v344 = vunpack.c.l.b16 %v329
        %v345 = vunpack.c.l.b16 %v330
        %v346 = vpack.c.b16 %v343, %v342
        %v347 = vpack.c.b16 %v345, %v344
        %vm350 = vcmask 261120
        %v352 = vsel %vm350, %v326, 0
        %354 = vmatprep.subr.bf16.mxu0 0
        %355 = vmatpush1.bf16.msra.mxu0 %v346
        %356 = vmatprep.subr.bf16.mxu0 0
        %357 = vmatpush1.bf16.msra.mxu0 %v347
        %358 = vmatprep.subr.bf16.mxu0 0
        %359 = vmatpush1.bf16.msra.mxu0 0
        %360 = vmatprep.subr.bf16.mxu0 0
        %361 = vmatpush1.bf16.msra.mxu0 0
        %362 = vmatprep.subr.bf16.mxu0 0
        %363 = vmatpush1.bf16.msra.mxu0 0
        %364 = vmatprep.subr.bf16.mxu0 0
        %365 = vmatpush1.bf16.msra.mxu0 0
        %366 = vmatprep.subr.bf16.mxu0 0
        %367 = vmatpush1.bf16.msra.mxu0 0
        %368 = vmatprep.subr.bf16.mxu0 0
        %369 = vmatpush1.bf16.msra.mxu0 0
        %370 = vmatprep.subr.bf16.mxu0 0
        %371 = vmatpush1.bf16.msra.mxu0 0
        %372 = vmatprep.subr.bf16.mxu0 0
        %373 = vmatpush1.bf16.msra.mxu0 0
        %374 = vmatprep.subr.bf16.mxu0 0
        %375 = vmatpush1.bf16.msra.mxu0 0
        %376 = vmatprep.subr.bf16.mxu0 0
        %377 = vmatpush1.bf16.msra.mxu0 0
        %378 = vmatprep.subr.bf16.mxu0 0
        %379 = vmatpush1.bf16.msra.mxu0 0
        %380 = vmatprep.subr.bf16.mxu0 0
        %381 = vmatpush1.bf16.msra.mxu0 0
        %382 = vmatprep.subr.bf16.mxu0 0
        %383 = vmatpush1.bf16.msra.mxu0 0
        %384 = vmatprep.subr.bf16.mxu0 0
        %385 = vmatpush1.bf16.msra.mxu0 0
        %386 = vmatprep.mubr.bf16.mxu0 0
        %387 = vmatmul.mubr.bf16.gmra.mrb[0].mxu0 %v352
        %v388 = vpop.f32.mrb[0].mxu0
        %v389 = vadd.f32 %v336, %v388
        %v390 = vpop.f32.mrb[0].mxu0
        %v391 = vpop.f32.mrb[0].mxu0
        %v392 = vpop.f32.mrb[0].mxu0
        %393 = vdwg.mxu0
        %v394 = vld [vmem:[#allocation7] sm:$0xf]
        %v395 = vld [vmem:[#allocation7 + $0x4] sm:$0xf]
        %v396 = vld [vmem:[#allocation7 + $0x8] sm:$0xf]
        %v397 = vld [vmem:[#allocation7 + $0xc] sm:$0xf]
        %v398 = vld [vmem:[%s324] sm:$0x1]
        %v400 = vlaneseq
        %v401 = vshrl.u32 %v400, 7
        %v402 = vsub.s32 0, %v401
        %v403 = vrot.slane %v398, %v402
        %v409 = vunpack.c.l.b16 %v394
        %v410 = vunpack.c.l.b16 %v395
        %v411 = vunpack.c.l.b16 %v396
        %v412 = vunpack.c.l.b16 %v397
        %v413 = vpack.c.b16 %v410, %v409
        %v414 = vpack.c.b16 %v412, %v411
        %417 = vmatprep.subr.bf16.mxu0 0
        %418 = vmatpush1.bf16.msra.mxu0 %v413
        %419 = vmatprep.subr.bf16.mxu0 0
        %420 = vmatpush1.bf16.msra.mxu0 %v414
        %421 = vmatprep.subr.bf16.mxu0 0
        %422 = vmatpush1.bf16.msra.mxu0 0
        %423 = vmatprep.subr.bf16.mxu0 0
        %424 = vmatpush1.bf16.msra.mxu0 0
        %425 = vmatprep.subr.bf16.mxu0 0
        %426 = vmatpush1.bf16.msra.mxu0 0
        %427 = vmatprep.subr.bf16.mxu0 0
        %428 = vmatpush1.bf16.msra.mxu0 0
        %429 = vmatprep.subr.bf16.mxu0 0
        %430 = vmatpush1.bf16.msra.mxu0 0
        %431 = vmatprep.subr.bf16.mxu0 0
        %432 = vmatpush1.bf16.msra.mxu0 0
        %433 = vmatprep.subr.bf16.mxu0 0
        %434 = vmatpush1.bf16.msra.mxu0 0
        %435 = vmatprep.subr.bf16.mxu0 0
        %436 = vmatpush1.bf16.msra.mxu0 0
        %437 = vmatprep.subr.bf16.mxu0 0
        %438 = vmatpush1.bf16.msra.mxu0 0
        %439 = vmatprep.subr.bf16.mxu0 0
        %440 = vmatpush1.bf16.msra.mxu0 0
        %441 = vmatprep.subr.bf16.mxu0 0
        %442 = vmatpush1.bf16.msra.mxu0 0
        %443 = vmatprep.subr.bf16.mxu0 0
        %444 = vmatpush1.bf16.msra.mxu0 0
        %445 = vmatprep.subr.bf16.mxu0 0
        %446 = vmatpush1.bf16.msra.mxu0 0
        %447 = vmatprep.subr.bf16.mxu0 0
        %448 = vmatpush1.bf16.msra.mxu0 0
        %449 = vmatprep.mubr.bf16.mxu0 0
        %450 = vmatmul.mubr.bf16.gmra.mrb[0].mxu0 %v352
        %v451 = vpop.f32.mrb[0].mxu0
        %v452 = vadd.f32 %v403, %v451
        %v453 = vpop.f32.mrb[0].mxu0
        %v454 = vpop.f32.mrb[0].mxu0
        %v455 = vpop.f32.mrb[0].mxu0
        %456 = vdwg.mxu0
        %v457 = vxor.u32 %v452, 2147483648
        %v458 = vmul.f32 %v457, 1.442695
        %v459 = vpow.pop %v458
        %v460 = vadd.f32 %v459, 1.0
        %v461 = vrcp.pop %v460
        %v462 = vmul.f32 1.0, %v461
        %v463 = vmul.f32 %v389, %v462
        %464 = vst.msk [vmem:[%s318] sm:$0xff] %vm350, %v463
        %s465 = sand.u32 %s175, 1
        %s466 = scalar_lea.sflag [#allocation4], %s465
        %s467 = sand.u32 %s175, 1
        %s468 = smul.addr %s467, 8
        %s469 = scalar_lea.vmem [#allocation8], %s468
        // Predicated region
        $region53: #{tpu_custom_call.1} parent=39 // pred_check
          %p470 = pneg %p185
        $region54: #{tpu_custom_call.1} parent=39 // pred_check_branch
          %472 = sbr.rel (%p470) target = $region56
        $region55: #{tpu_custom_call.1} parent=39 // pred_region
          %s474 = ssub.s32 128, 128
          %475 = vsyncadd %s466, %s474
          %s476 = sadd.s32 %s28, %s27
          %s477 = smul.addr %s476, 128
          %s478 = scalar_lea.hbm %s5, %s477
          %s480 = sshll.u32 %s469, 4
          %s481 = int_to_ptr.vmem [resolvable:$true] %s480
          %483 = dma.vmem_to_hbm [thread:$0]  %s481, 128, %s478, %s466
        $region56: #{tpu_custom_call.1} parent=39 // pred_fallthru
          _
      $region40: #{tpu_custom_call.1} parent=5 // pred_fallthru
        _
      %p484 = scmp.le.s32.totalorder 2, %s18
      // Predicated region
      $region57: #{tpu_custom_call.1} parent=5 // pred_check
        %p485 = pneg %p484
      $region58: #{tpu_custom_call.1} parent=5 // pred_check_branch
        %487 = sbr.rel (%p485) target = $region60
      $region59: #{tpu_custom_call.1} parent=5 // pred_region
        %s488 = ssub.s32 %s18, 2
        // Predicated region
        $region61: #{tpu_custom_call.1} parent=59 // pred_check
          %p489 = pneg %p191
        $region62: #{tpu_custom_call.1} parent=59 // pred_check_branch
          %491 = sbr.rel (%p489) target = $region64
        $region63: #{tpu_custom_call.1} parent=59 // pred_region
          %s492 = sand.u32 %s176, 1
          %s493 = scalar_lea.sflag [#allocation4], %s492
          %s494 = sand.u32 %s176, 1
          %s495 = smul.addr %s494, 8
          %s496 = scalar_lea.vmem [#allocation8], %s495
          %497 = dma.done %s493, 128
        $region64: #{tpu_custom_call.1} parent=59 // pred_fallthru
          _
      $region60: #{tpu_custom_call.1} parent=5 // pred_fallthru
        _
    $region6: #{tpu_custom_call.1} parent=1 // loop_footer
      %s22 = sadd.s32 1, %s18
    $region7: #{tpu_custom_call.1} parent=1 // loop_footer_branch
      %17 = sbr.rel target = $region3
    $region8: #{tpu_custom_call.1} parent=1 // loop_exit
      _
    %498 = vsyncpa [#allocation3], 1
    %s499 = scalar_lea.sflag [#allocation3], 1
    %500 = vsyncpa %s499, 1
    %501 = vsyncpa [#allocation6], 1
    %502 = vsyncpa [#allocation4], 1
    %s503 = scalar_lea.sflag [#allocation4], 1
    %504 = vsyncpa %s503, 1

// kernel: tpu_custom_call.1
$region0: #{tpu_custom_call.1}
  #allocation0 [shape = 'u32[]', space=smem, size = 0x4, offset = 0x4, fixed_abs, tag = 'smem constant byte address 0x4 - core index']
  #allocation1 [shape = 'u32[144,128]{1,0:T(1,128)}', space=vmem, size = 0x12000, scoped, tag = 'internal scratch']
  %s0 = inlined_call_operand.hbm [shape: bf16[16,32], index: 0, kind: input, shape index: {}]
  %s1 = inlined_call_operand.hbm [shape: bf16[32,32], index: 1, kind: input, shape index: {}]
  %s2 = inlined_call_operand.hbm [shape: bf16[32,32], index: 2, kind: input, shape index: {}]
  %s3 = inlined_call_operand.vmem [shape: f32[1,32], index: 3, kind: input, shape index: {}]
  %s4 = inlined_call_operand.vmem [shape: f32[1,32], index: 4, kind: input, shape index: {}]
  %s5 = inlined_call_operand.hbm [shape: f32[16,32], index: 5, kind: output, shape index: {}]
  %s6 = sld [smem:[#allocation0]]
  $region65: #{tpu_custom_call.1} parent=0
    _
  %s8 = ssub.s32 1, %s6
  %s9 = scalar_select 0, %s8, %s6
  $region1: #{tpu_custom_call.1} parent=0
    #allocation2 [shape = 'u8[4096]{0}', space=vmem, size = 0x1000, scoped, tag = 'input window, operand 0']
    #allocation3 [shape = 's32[2]{0}', space=sflag, size = 0x8, scoped, tag = 'scoped memory for tpu_custom_call.1']
    #allocation4 [shape = 's32[2]{0}', space=sflag, size = 0x8, scoped, tag = 'scoped memory for tpu_custom_call.1']
    #allocation5 [shape = 'u8[8192]{0}', space=vmem, size = 0x2000, scoped, tag = 'input window, operand 1, single buffered']
    #allocation6 [shape = 's32[1]{0}', space=sflag, size = 0x4, scoped, tag = 'scoped memory for tpu_custom_call.1']
    #allocation7 [shape = 'u8[8192]{0}', space=vmem, size = 0x2000, scoped, tag = 'input window, operand 2, single buffered']
    #allocation8 [shape = 'u8[8192]{0}', space=vmem, size = 0x2000, scoped, tag = 'output window, operand 0']
    %10 = vsyncpa [#allocation3], 0
    %s11 = scalar_lea.sflag [#allocation3], 1
    %12 = vsyncpa %s11, 0
    %13 = vsyncpa [#allocation6], 0
    %14 = vsyncpa [#allocation4], 0
    %s15 = scalar_lea.sflag [#allocation4], 1
    %16 = vsyncpa %s15, 0
    loop: start=0, step=1, limit=4
    $region2: #{tpu_custom_call.1} parent=1 // loop_pre_header
      _
    $region3: #{tpu_custom_call.1} parent=1 // loop_header
      %s18 = sphi 0, %s22
      %p19 = scmp.ge.s32.totalorder %s18, 4
      %s25 = sphi 0, %s37
      %s26 = sphi 0, %s33
      %s27 = sphi 0, %s25
      %s28 = sphi 0, %s26
      %s29 = sphi 0, %s27
      %s30 = sphi 0, %s28
      %s40 = sphi 0, %s42
      %s43 = sphi 0, %s40
      %s44 = sphi 0, %s43
      %s60 = sphi 0, %s44
      %s66 = sphi 0, %s68
      %s69 = sphi 0, %s66
      %s70 = sphi 0, %s69
      %s86 = sphi 0, %s70
      %s92 = sphi 0, %s94
      %s95 = sphi 0, %s92
      %s96 = sphi 0, %s95
      %s112 = sphi 0, %s96
      %s118 = sphi 0, %s120
      %s121 = sphi 0, %s118
      %s122 = sphi 0, %s121
      %s138 = sphi 0, %s122
      %s144 = sphi 0, %s146
      %s147 = sphi 0, %s144
      %s148 = sphi 0, %s147
      %s164 = sphi 0, %s148
      %s172 = sphi 0, %s174
      %s175 = sphi 0, %s172
      %s176 = sphi 0, %s175
      %s192 = sphi 0, %s176
    $region4: #{tpu_custom_call.1} parent=1 // loop_header_branch
      %21 = sbr.rel (%p19) target = $region8
    $region5: #{tpu_custom_call.1} parent=1 // loop_body
      %s23 = ssub.s32 %s18, 1
      %s24 = ssub.s32 %s18, 2
      %s31 = sadd.s32 1, %s26
      %p32 = scmp.ge.s32.totalorder %s31, 1
      %s33 = scalar_select %p32, 0, %s31
      %s34 = sadd.s32 1, %s25
      %s35 = scalar_select %p32, %s34, %s25
      %p36 = scmp.ge.s32.totalorder %s35, 2
      %s37 = scalar_select %p36, 0, %s35
      %s38 = ssub.s32 %s25, %s37
      %p39 = scmp.eq.s32.totalorder %s38, 0
      %s41 = sadd.s32 %s40, 1
      %s42 = scalar_select %p39, %s40, %s41
      %p45 = pneg %p39
      %p46 = scmp.eq.s32.totalorder %s18, 1
      %p47 = por %p45, %p46
      %p48 = scmp.ne.s32.totalorder %s40, %s43
      %p49 = scmp.eq.s32.totalorder %s18, 0
      %p50 = por %p48, %p49
      %p51 = scmp.ne.s32.totalorder %s40, %s43
      %p52 = scmp.eq.s32.totalorder %s23, 1
      %p53 = por %p51, %p52
      %p54 = scmp.ne.s32.totalorder %s43, %s44
      %p55 = scmp.eq.s32.totalorder %s23, 0
      %p56 = por %p54, %p55
      %p57 = scmp.ne.s32.totalorder %s43, %s44
      %p58 = scmp.eq.s32.totalorder %s24, 1
      %p59 = por %p57, %p58
      %p61 = scmp.ne.s32.totalorder %s44, %s60
      %p62 = scmp.eq.s32.totalorder %s24, 0
      %p63 = por %p61, %p62
      %s64 = ssub.s32 %s26, %s33
      %p65 = scmp.eq.s32.totalorder %s64, 0
      %s67 = sadd.s32 %s66, 1
      %s68 = scalar_select %p65, %s66, %s67
      %p71 = pneg %p65
      %p72 = scmp.eq.s32.totalorder %s18, 1
      %p73 = por %p71, %p72
      %p74 = scmp.ne.s32.totalorder %s66, %s69
      %p75 = scmp.eq.s32.totalorder %s18, 0
      %p76 = por %p74, %p75
      %p77 = scmp.ne.s32.totalorder %s66, %s69
      %p78 = scmp.eq.s32.totalorder %s23, 1
      %p79 = por %p77, %p78
      %p80 = scmp.ne.s32.totalorder %s69, %s70
      %p81 = scmp.eq.s32.totalorder %s23, 0
      %p82 = por %p80, %p81
      %p83 = scmp.ne.s32.totalorder %s69, %s70
      %p84 = scmp.eq.s32.totalorder %s24, 1
      %p85 = por %p83, %p84
      %p87 = scmp.ne.s32.totalorder %s70, %s86
      %p88 = scmp.eq.s32.totalorder %s24, 0
      %p89 = por %p87, %p88
      %s90 = ssub.s32 %s26, %s33
      %p91 = scmp.eq.s32.totalorder %s90, 0
      %s93 = sadd.s32 %s92, 1
      %s94 = scalar_select %p91, %s92, %s93
      %p97 = pneg %p91
      %p98 = scmp.eq.s32.totalorder %s18, 1
      %p99 = por %p97, %p98
      %p100 = scmp.ne.s32.totalorder %s92, %s95
      %p101 = scmp.eq.s32.totalorder %s18, 0
      %p102 = por %p100, %p101
      %p103 = scmp.ne.s32.totalorder %s92, %s95
      %p104 = scmp.eq.s32.totalorder %s23, 1
      %p105 = por %p103, %p104
      %p106 = scmp.ne.s32.totalorder %s95, %s96
      %p107 = scmp.eq.s32.totalorder %s23, 0
      %p108 = por %p106, %p107
      %p109 = scmp.ne.s32.totalorder %s95, %s96
      %p110 = scmp.eq.s32.totalorder %s24, 1
      %p111 = por %p109, %p110
      %p113 = scmp.ne.s32.totalorder %s96, %s112
      %p114 = scmp.eq.s32.totalorder %s24, 0
      %p115 = por %p113, %p114
      %s116 = ssub.s32 %s26, %s33
      %p117 = scmp.eq.s32.totalorder %s116, 0
      %s119 = sadd.s32 %s118, 1
      %s120 = scalar_select %p117, %s118, %s119
      %p123 = pneg %p117
      %p124 = scmp.eq.s32.totalorder %s18, 1
      %p125 = por %p123, %p124
      %p126 = scmp.ne.s32.totalorder %s118, %s121
      %p127 = scmp.eq.s32.totalorder %s18, 0
      %p128 = por %p126, %p127
      %p129 = scmp.ne.s32.totalorder %s118, %s121
      %p130 = scmp.eq.s32.totalorder %s23, 1
      %p131 = por %p129, %p130
      %p132 = scmp.ne.s32.totalorder %s121, %s122
      %p133 = scmp.eq.s32.totalorder %s23, 0
      %p134 = por %p132, %p133
      %p135 = scmp.ne.s32.totalorder %s121, %s122
      %p136 = scmp.eq.s32.totalorder %s24, 1
      %p137 = por %p135, %p136
      %p139 = scmp.ne.s32.totalorder %s122, %s138
      %p140 = scmp.eq.s32.totalorder %s24, 0
      %p141 = por %p139, %p140
      %s142 = ssub.s32 %s26, %s33
      %p143 = scmp.eq.s32.totalorder %s142, 0
      %s145 = sadd.s32 %s144, 1
      %s146 = scalar_select %p143, %s144, %s145
      %p149 = pneg %p143
      %p150 = scmp.eq.s32.totalorder %s18, 1
      %p151 = por %p149, %p150
      %p152 = scmp.ne.s32.totalorder %s144, %s147
      %p153 = scmp.eq.s32.totalorder %s18, 0
      %p154 = por %p152, %p153
      %p155 = scmp.ne.s32.totalorder %s144, %s147
      %p156 = scmp.eq.s32.totalorder %s23, 1
      %p157 = por %p155, %p156
      %p158 = scmp.ne.s32.totalorder %s147, %s148
      %p159 = scmp.eq.s32.totalorder %s23, 0
      %p160 = por %p158, %p159
      %p161 = scmp.ne.s32.totalorder %s147, %s148
      %p162 = scmp.eq.s32.totalorder %s24, 1
      %p163 = por %p161, %p162
      %p165 = scmp.ne.s32.totalorder %s148, %s164
      %p166 = scmp.eq.s32.totalorder %s24, 0
      %p167 = por %p165, %p166
      %s168 = ssub.s32 %s25, %s37
      %s169 = ssub.s32 %s26, %s33
      %s170 = sor.u32 %s168, %s169
      %p171 = scmp.eq.s32.totalorder %s170, 0
      %s173 = sadd.s32 %s172, 1
      %s174 = scalar_select %p171, %s172, %s173
      %p177 = pneg %p171
      %p178 = scmp.eq.s32.totalorder %s18, 1
      %p179 = por %p177, %p178
      %p180 = scmp.ne.s32.totalorder %s172, %s175
      %p181 = scmp.eq.s32.totalorder %s18, 0
      %p182 = por %p180, %p181
      %p183 = scmp.ne.s32.totalorder %s172, %s175
      %p184 = scmp.eq.s32.totalorder %s23, 1
      %p185 = por %p183, %p184
      %p186 = scmp.ne.s32.totalorder %s175, %s176
      %p187 = scmp.eq.s32.totalorder %s23, 0
      %p188 = por %p186, %p187
      %p189 = scmp.ne.s32.totalorder %s175, %s176
      %p190 = scmp.eq.s32.totalorder %s24, 1
      %p191 = por %p189, %p190
      %p193 = scmp.ne.s32.totalorder %s176, %s192
      %p194 = scmp.eq.s32.totalorder %s24, 0
      %p195 = por %p193, %p194
      %p196 = scmp.le.s32.totalorder 1, %s18
      %p197 = scmp.lt.s32.totalorder %s18, 3
      %p198 = pnand %p196, %p197
      %p199 = pneg %p198
      // Predicated region
      $region9: #{tpu_custom_call.1} parent=5 // pred_check
        _
      $region10: #{tpu_custom_call.1} parent=5 // pred_check_branch
        %201 = sbr.rel (%p198) target = $region12
      $region11: #{tpu_custom_call.1} parent=5 // pred_region
        %s202 = ssub.s32 %s18, 1
        // Predicated region
        $region13: #{tpu_custom_call.1} parent=11 // pred_check
          %p203 = pneg %p82
        $region14: #{tpu_custom_call.1} parent=11 // pred_check_branch
          %205 = sbr.rel (%p203) target = $region16
        $region15: #{tpu_custom_call.1} parent=11 // pred_region
          %s207 = ssub.s32 256, 256
          %208 = vsyncadd [#allocation6], %s207
          %s209 = smul.addr %s28, 64
          %s210 = scalar_lea.hbm %s1, %s209
          %s211 = sshll.u32 [#allocation5], 4
          %s212 = int_to_ptr.vmem [resolvable:$true] %s211
          %217 = dma.hbm_to_vmem [thread:$0]  %s210, 256, %s212, [#allocation6], 64, 64, 4
        $region16: #{tpu_custom_call.1} parent=11 // pred_fallthru
          _
        // Predicated region
        $region17: #{tpu_custom_call.1} parent=11 // pred_check
          %p218 = pneg %p108
        $region18: #{tpu_custom_call.1} parent=11 // pred_check_branch
          %220 = sbr.rel (%p218) target = $region20
        $region19: #{tpu_custom_call.1} parent=11 // pred_region
          %s222 = ssub.s32 256, 256
          %223 = vsyncadd [#allocation6], %s222
          %s224 = smul.addr %s28, 64
          %s225 = scalar_lea.hbm %s2, %s224
          %s226 = sshll.u32 [#allocation7], 4
          %s227 = int_to_ptr.vmem [resolvable:$true] %s226
          %232 = dma.hbm_to_vmem [thread:$0]  %s225, 256, %s227, [#allocation6], 64, 64, 4
        $region20: #{tpu_custom_call.1} parent=11 // pred_fallthru
          _
        // Predicated region
        $region21: #{tpu_custom_call.1} parent=11 // pred_check
          %p233 = pneg %p134
        $region22: #{tpu_custom_call.1} parent=11 // pred_check_branch
          %235 = sbr.rel (%p233) target = $region24
        $region23: #{tpu_custom_call.1} parent=11 // pred_region
          %p236 = scmp.lt.s32.totalorder %s28, 0
          %s237 = scalar_select %p236, %s28, 0
          %s238 = scalar_lea.vmem %s3, %s237
        $region24: #{tpu_custom_call.1} parent=11 // pred_fallthru
          _
        // Predicated region
        $region25: #{tpu_custom_call.1} parent=11 // pred_check
          %p239 = pneg %p160
        $region26: #{tpu_custom_call.1} parent=11 // pred_check_branch
          %241 = sbr.rel (%p239) target = $region28
        $region27: #{tpu_custom_call.1} parent=11 // pred_region
          %p242 = scmp.lt.s32.totalorder %s28, 0
          %s243 = scalar_select %p242, %s28, 0
          %s244 = scalar_lea.vmem %s4, %s243
        $region28: #{tpu_custom_call.1} parent=11 // pred_fallthru
          _
      $region12: #{tpu_custom_call.1} parent=5 // pred_fallthru
        _
      %p245 = scmp.lt.s32.totalorder %s18, 2
      // Predicated region
      $region29: #{tpu_custom_call.1} parent=5 // pred_check
        %p246 = pneg %p245
      $region30: #{tpu_custom_call.1} parent=5 // pred_check_branch
        %248 = sbr.rel (%p246) target = $region32
      $region31: #{tpu_custom_call.1} parent=5 // pred_region
        // Predicated region
        $region33: #{tpu_custom_call.1} parent=31 // pred_check
          %p249 = pneg %p50
        $region34: #{tpu_custom_call.1} parent=31 // pred_check_branch
          %251 = sbr.rel (%p249) target = $region36
        $region35: #{tpu_custom_call.1} parent=31 // pred_region
          %s252 = sand.u32 %s40, 1
          %s253 = scalar_lea.sflag [#allocation3], %s252
          %s254 = sand.u32 %s40, 1
          %s255 = smul.addr %s254, 4
          %s256 = scalar_lea.vmem [#allocation2], %s255
          %s258 = ssub.s32 64, 64
          %259 = vsyncadd %s253, %s258
          %s260 = smul.addr %s25, 64
          %s261 = scalar_lea.hbm %s0, %s260
          %s263 = sshll.u32 %s256, 4
          %s264 = int_to_ptr.vmem [resolvable:$true] %s263
          %266 = dma.hbm_to_vmem [thread:$0]  %s261, 64, %s264, %s253
        $region36: #{tpu_custom_call.1} parent=31 // pred_fallthru
          _
      $region32: #{tpu_custom_call.1} parent=5 // pred_fallthru
        _
      %p267 = scmp.le.s32.totalorder 1, %s18
      %p268 = scmp.lt.s32.totalorder %s18, 3
      %p269 = pnand %p267, %p268
      %p270 = pneg %p269
      // Predicated region
      $region37: #{tpu_custom_call.1} parent=5 // pred_check
        _
      $region38: #{tpu_custom_call.1} parent=5 // pred_check_branch
        %272 = sbr.rel (%p269) target = $region40
      $region39: #{tpu_custom_call.1} parent=5 // pred_region
        %s273 = ssub.s32 %s18, 1
        %s274 = sand.u32 %s43, 1
        %s275 = scalar_lea.sflag [#allocation3], %s274
        %s276 = sand.u32 %s43, 1
        %s277 = smul.addr %s276, 4
        %s278 = scalar_lea.vmem [#allocation2], %s277
        // Predicated region
        $region41: #{tpu_custom_call.1} parent=39 // pred_check
          %p279 = pneg %p56
        $region42: #{tpu_custom_call.1} parent=39 // pred_check_branch
          %281 = sbr.rel (%p279) target = $region44
        $region43: #{tpu_custom_call.1} parent=39 // pred_region
          %282 = dma.done %s275, 64
        $region44: #{tpu_custom_call.1} parent=39 // pred_fallthru
          _
        // Predicated region
        $region45: #{tpu_custom_call.1} parent=39 // pred_check
          %p283 = pneg %p82
        $region46: #{tpu_custom_call.1} parent=39 // pred_check_branch
          %285 = sbr.rel (%p283) target = $region48
        $region47: #{tpu_custom_call.1} parent=39 // pred_region
          %286 = dma.done [#allocation6], 256
        $region48: #{tpu_custom_call.1} parent=39 // pred_fallthru
          _
        // Predicated region
        $region49: #{tpu_custom_call.1} parent=39 // pred_check
          %p287 = pneg %p108
        $region50: #{tpu_custom_call.1} parent=39 // pred_check_branch
          %289 = sbr.rel (%p287) target = $region52
        $region51: #{tpu_custom_call.1} parent=39 // pred_region
          %290 = dma.done [#allocation6], 256
        $region52: #{tpu_custom_call.1} parent=39 // pred_fallthru
          _
        %s291 = sand.u32 %s43, 1
        %s292 = scalar_lea.sflag [#allocation3], %s291
        %s293 = sand.u32 %s43, 1
        %s294 = smul.addr %s293, 4
        %s295 = scalar_lea.vmem [#allocation2], %s294
        %p296 = pneg %p56
        %p297 = pneg %p53
        %p298 = pneg %p82
        %p299 = pneg %p79
        %p300 = pneg %p108
        %p301 = pneg %p105
        %p302 = scmp.lt.s32.totalorder %s28, 0
        %s303 = scalar_select %p302, %s28, 0
        %s304 = scalar_lea.vmem %s3, %s303
        %p305 = pneg %p134
        %p306 = pneg %p131
        %p307 = scmp.lt.s32.totalorder %s28, 0
        %s308 = scalar_select %p307, %s28, 0
        %s309 = scalar_lea.vmem %s4, %s308
        %p310 = pneg %p160
        %p311 = pneg %p157
        %p312 = pneg %p188
        %p313 = pneg %p185
        %s314 = sand.u32 %s175, 1
        %s315 = scalar_lea.sflag [#allocation4], %s314
        %s316 = sand.u32 %s175, 1
        %s317 = smul.addr %s316, 8
        %s318 = scalar_lea.vmem [#allocation8], %s317
        %p319 = scmp.lt.s32.totalorder %s28, 0
        %s320 = scalar_select %p319, %s28, 0
        %s321 = scalar_lea.vmem %s3, %s320
        %p322 = scmp.lt.s32.totalorder %s28, 0
        %s323 = scalar_select %p322, %s28, 0
        %s324 = scalar_lea.vmem %s4, %s323
        %v326 = vld [vmem:[%s278] sm:$0xf]
        %v327 = vld [vmem:[#allocation5] sm:$0xf]
        %v328 = vld [vmem:[#allocation5 + $0x4] sm:$0xf]
        %v329 = vld [vmem:[#allocation5 + $0x8] sm:$0xf]
        %v330 = vld [vmem:[#allocation5 + $0xc] sm:$0xf]
        %v331 = vld [vmem:[%s321] sm:$0x1]
        %v333 = vlaneseq
        %v334 = vshrl.u32 %v333, 7
        %v335 = vsub.s32 0, %v334
        %v336 = vrot.slane %v331, %v335
        %v342 = vunpack.c.l.b16 %v327
        %v343 = vunpack.c.l.b16 %v328
        %v344 = vunpack.c.l.b16 %v329
        %v345 = vunpack.c.l.b16 %v330
        %v346 = vpack.c.b16 %v343, %v342
        %v347 = vpack.c.b16 %v345, %v344
        %vm350 = vcmask 261120
        %v352 = vsel %vm350, %v326, 0
        %354 = vmatprep.subr.bf16.mxu0 0
        %355 = vmatpush1.bf16.msra.mxu0 %v346
        %356 = vmatprep.subr.bf16.mxu0 0
        %357 = vmatpush1.bf16.msra.mxu0 %v347
        %358 = vmatprep.subr.bf16.mxu0 0
        %359 = vmatpush1.bf16.msra.mxu0 0
        %360 = vmatprep.subr.bf16.mxu0 0
        %361 = vmatpush1.bf16.msra.mxu0 0
        %362 = vmatprep.subr.bf16.mxu0 0
        %363 = vmatpush1.bf16.msra.mxu0 0
        %364 = vmatprep.subr.bf16.mxu0 0
        %365 = vmatpush1.bf16.msra.mxu0 0
        %366 = vmatprep.subr.bf16.mxu0 0
        %367 = vmatpush1.bf16.msra.mxu0 0
        %368 = vmatprep.subr.bf16.mxu0 0
        %369 = vmatpush1.bf16.msra.mxu0 0
        %370 = vmatprep.subr.bf16.mxu0 0
        %371 = vmatpush1.bf16.msra.mxu0 0
        %372 = vmatprep.subr.bf16.mxu0 0
        %373 = vmatpush1.bf16.msra.mxu0 0
        %374 = vmatprep.subr.bf16.mxu0 0
        %375 = vmatpush1.bf16.msra.mxu0 0
        %376 = vmatprep.subr.bf16.mxu0 0
        %377 = vmatpush1.bf16.msra.mxu0 0
        %378 = vmatprep.subr.bf16.mxu0 0
        %379 = vmatpush1.bf16.msra.mxu0 0
        %380 = vmatprep.subr.bf16.mxu0 0
        %381 = vmatpush1.bf16.msra.mxu0 0
        %382 = vmatprep.subr.bf16.mxu0 0
        %383 = vmatpush1.bf16.msra.mxu0 0
        %384 = vmatprep.subr.bf16.mxu0 0
        %385 = vmatpush1.bf16.msra.mxu0 0
        %386 = vmatprep.mubr.bf16.mxu0 0
        %387 = vmatmul.mubr.bf16.gmra.mrb[0].mxu0 %v352
        %v388 = vpop.f32.mrb[0].mxu0
        %v389 = vadd.f32 %v336, %v388
        %v390 = vpop.f32.mrb[0].mxu0
        %v391 = vpop.f32.mrb[0].mxu0
        %v392 = vpop.f32.mrb[0].mxu0
        %393 = vdwg.mxu0
        %v394 = vld [vmem:[#allocation7] sm:$0xf]
        %v395 = vld [vmem:[#allocation7 + $0x4] sm:$0xf]
        %v396 = vld [vmem:[#allocation7 + $0x8] sm:$0xf]
        %v397 = vld [vmem:[#allocation7 + $0xc] sm:$0xf]
        %v398 = vld [vmem:[%s324] sm:$0x1]
        %v400 = vlaneseq
        %v401 = vshrl.u32 %v400, 7
        %v402 = vsub.s32 0, %v401
        %v403 = vrot.slane %v398, %v402
        %v409 = vunpack.c.l.b16 %v394
        %v410 = vunpack.c.l.b16 %v395
        %v411 = vunpack.c.l.b16 %v396
        %v412 = vunpack.c.l.b16 %v397
        %v413 = vpack.c.b16 %v410, %v409
        %v414 = vpack.c.b16 %v412, %v411
        %417 = vmatprep.subr.bf16.mxu0 0
        %418 = vmatpush1.bf16.msra.mxu0 %v413
        %419 = vmatprep.subr.bf16.mxu0 0
        %420 = vmatpush1.bf16.msra.mxu0 %v414
        %421 = vmatprep.subr.bf16.mxu0 0
        %422 = vmatpush1.bf16.msra.mxu0 0
        %423 = vmatprep.subr.bf16.mxu0 0
        %424 = vmatpush1.bf16.msra.mxu0 0
        %425 = vmatprep.subr.bf16.mxu0 0
        %426 = vmatpush1.bf16.msra.mxu0 0
        %427 = vmatprep.subr.bf16.mxu0 0
        %428 = vmatpush1.bf16.msra.mxu0 0
        %429 = vmatprep.subr.bf16.mxu0 0
        %430 = vmatpush1.bf16.msra.mxu0 0
        %431 = vmatprep.subr.bf16.mxu0 0
        %432 = vmatpush1.bf16.msra.mxu0 0
        %433 = vmatprep.subr.bf16.mxu0 0
        %434 = vmatpush1.bf16.msra.mxu0 0
        %435 = vmatprep.subr.bf16.mxu0 0
        %436 = vmatpush1.bf16.msra.mxu0 0
        %437 = vmatprep.subr.bf16.mxu0 0
        %438 = vmatpush1.bf16.msra.mxu0 0
        %439 = vmatprep.subr.bf16.mxu0 0
        %440 = vmatpush1.bf16.msra.mxu0 0
        %441 = vmatprep.subr.bf16.mxu0 0
        %442 = vmatpush1.bf16.msra.mxu0 0
        %443 = vmatprep.subr.bf16.mxu0 0
        %444 = vmatpush1.bf16.msra.mxu0 0
        %445 = vmatprep.subr.bf16.mxu0 0
        %446 = vmatpush1.bf16.msra.mxu0 0
        %447 = vmatprep.subr.bf16.mxu0 0
        %448 = vmatpush1.bf16.msra.mxu0 0
        %449 = vmatprep.mubr.bf16.mxu0 0
        %450 = vmatmul.mubr.bf16.gmra.mrb[0].mxu0 %v352
        %v451 = vpop.f32.mrb[0].mxu0
        %v452 = vadd.f32 %v403, %v451
        %v453 = vpop.f32.mrb[0].mxu0
        %v454 = vpop.f32.mrb[0].mxu0
        %v455 = vpop.f32.mrb[0].mxu0
        %456 = vdwg.mxu0
        %v457 = vxor.u32 %v452, 2147483648
        %v458 = vmul.f32 %v457, 1.442695
        %v459 = vpow.pop %v458
        %v460 = vadd.f32 %v459, 1.0
        %v461 = vrcp.pop %v460
        %v462 = vmul.f32 1.0, %v461
        %v463 = vmul.f32 %v389, %v462
        %464 = vst.msk [vmem:[%s318] sm:$0xff] %vm350, %v463
        %s465 = sand.u32 %s175, 1
        %s466 = scalar_lea.sflag [#allocation4], %s465
        %s467 = sand.u32 %s175, 1
        %s468 = smul.addr %s467, 8
        %s469 = scalar_lea.vmem [#allocation8], %s468
        // Predicated region
        $region53: #{tpu_custom_call.1} parent=39 // pred_check
          %p470 = pneg %p185
        $region54: #{tpu_custom_call.1} parent=39 // pred_check_branch
          %472 = sbr.rel (%p470) target = $region56
        $region55: #{tpu_custom_call.1} parent=39 // pred_region
          %s474 = ssub.s32 128, 128
          %475 = vsyncadd %s466, %s474
          %s476 = sadd.s32 %s28, %s27
          %s477 = smul.addr %s476, 128
          %s478 = scalar_lea.hbm %s5, %s477
          %s480 = sshll.u32 %s469, 4
          %s481 = int_to_ptr.vmem [resolvable:$true] %s480
          %483 = dma.vmem_to_hbm [thread:$0]  %s481, 128, %s478, %s466
        $region56: #{tpu_custom_call.1} parent=39 // pred_fallthru
          _
      $region40: #{tpu_custom_call.1} parent=5 // pred_fallthru
        _
      %p484 = scmp.le.s32.totalorder 2, %s18
      // Predicated region
      $region57: #{tpu_custom_call.1} parent=5 // pred_check
        %p485 = pneg %p484
      $region58: #{tpu_custom_call.1} parent=5 // pred_check_branch
        %487 = sbr.rel (%p485) target = $region60
      $region59: #{tpu_custom_call.1} parent=5 // pred_region
        %s488 = ssub.s32 %s18, 2
        // Predicated region
        $region61: #{tpu_custom_call.1} parent=59 // pred_check
          %p489 = pneg %p191
        $region62: #{tpu_custom_call.1} parent=59 // pred_check_branch
          %491 = sbr.rel (%p489) target = $region64
        $region63: #{tpu_custom_call.1} parent=59 // pred_region
          %s492 = sand.u32 %s176, 1
          %s493 = scalar_lea.sflag [#allocation4], %s492
          %s494 = sand.u32 %s176, 1
          %s495 = smul.addr %s494, 8
          %s496 = scalar_lea.vmem [#allocation8], %s495
          %497 = dma.done %s493, 128
        $region64: #{tpu_custom_call.1} parent=59 // pred_fallthru
          _
      $region60: #{tpu_custom_call.1} parent=5 // pred_fallthru
        _
    $region6: #{tpu_custom_call.1} parent=1 // loop_footer
      %s22 = sadd.s32 1, %s18
    $region7: #{tpu_custom_call.1} parent=1 // loop_footer_branch
      %17 = sbr.rel target = $region3
    $region8: #{tpu_custom_call.1} parent=1 // loop_exit
      _
    %498 = vsyncpa [#allocation3], 1
    %s499 = scalar_lea.sflag [#allocation3], 1
    %500 = vsyncpa %s499, 1
    %501 = vsyncpa [#allocation6], 1
    %502 = vsyncpa [#allocation4], 1
    %s503 = scalar_lea.sflag [#allocation4], 1
    %504 = vsyncpa %s503, 1

</llo_original>
